<compile_context>
chip_gen: v7x
topology: tpu7x:2x2x1
jax: 0.10.0
libtpu: 0.0.40
codegen_flags: <defaults>
</compile_context>

<pallas_src>
import functools
import math

import jax
import jax.numpy as jnp
from jax import lax
from jax.experimental import pallas as pl
from jax.experimental.pallas import tpu as pltpu


ACT_DTYPE = jnp.bfloat16          # activation / weight storage dtype (MXU inputs)
VMEM_LIMIT = 32 * 1024 * 1024     # explicit scoped-VMEM limit (loud failures)


# ---------------------------------------------------------------------------
# Tiled matmul with fused bias (MXU)
# ---------------------------------------------------------------------------

def _pick_tile(d, cands):
    for c in cands:
        if d % c == 0:
            return c
    return d  # full-dim block (always legal)


def _matmul_kernel(a_ref, b_ref, bias_ref, o_ref, acc_ref):
    @pl.when(pl.program_id(2) == 0)
    def _():
        acc_ref[...] = jnp.zeros_like(acc_ref)

    acc_ref[...] += jnp.dot(a_ref[...], b_ref[...],
                            preferred_element_type=jnp.float32)

    @pl.when(pl.program_id(2) == pl.num_programs(2) - 1)
    def _():
        o_ref[...] = (acc_ref[...] + bias_ref[...].astype(jnp.float32)
                      ).astype(o_ref.dtype)


def pallas_matmul(a, b, bias=None, out_dtype=None):
    """(M,K) @ (K,N) + bias.  bf16 MXU inputs, f32 accumulation, no pad copies."""
    M, K = a.shape
    K2, N = b.shape
    assert K == K2, (a.shape, b.shape)
    out_dtype = out_dtype or ACT_DTYPE
    a = a.astype(ACT_DTYPE)
    b = b.astype(ACT_DTYPE)
    if bias is None:
        bias = jnp.zeros((N,), jnp.float32)
    bias = bias.astype(jnp.float32).reshape(1, N)

    tm = _pick_tile(M, (256, 128))
    tk = _pick_tile(K, (512, 256, 128))
    tn = _pick_tile(N, (256, 128))

    return pl.pallas_call(
        _matmul_kernel,
        out_shape=jax.ShapeDtypeStruct((M, N), out_dtype),
        grid=(M // tm, N // tn, K // tk),
        in_specs=[pl.BlockSpec((tm, tk), lambda i, j, k: (i, k)),
                  pl.BlockSpec((tk, tn), lambda i, j, k: (k, j)),
                  pl.BlockSpec((1, tn), lambda i, j, k: (0, j))],
        out_specs=pl.BlockSpec((tm, tn), lambda i, j, k: (i, j)),
        scratch_shapes=[pltpu.VMEM((tm, tn), jnp.float32)],
        compiler_params=pltpu.CompilerParams(
            dimension_semantics=("parallel", "parallel", "arbitrary"),
            vmem_limit_bytes=VMEM_LIMIT),
    )(a, b, bias)


def linear(x, p, out_dtype=None):
    return pallas_matmul(x, p['w'], p['b'], out_dtype=out_dtype)


# ---------------------------------------------------------------------------
# Fused 3x3x3 "same"-padding stride-1 conv (no im2col materialization)
# ---------------------------------------------------------------------------

def _conv3d_kernel(x_ref, w_ref, b_ref, o_ref, acc_ref, *, n_f, kd, taps, offs,
                   m_rows):
    # x_ref:  (1, Fp, R, Cin)   padded activation plane-stack for one batch item
    # w_ref:  (kd*kh*kw, Cin, tn)
    # b_ref:  (1, tn)
    # o_ref:  (1, n_f*m_rows, tn)
    bias = b_ref[...].astype(jnp.float32)
    for fo in range(n_f):
        acc_ref[...] = jnp.zeros_like(acc_ref)
        for z in range(kd):
            for t in range(taps):
                a = x_ref[0, fo + z, pl.ds(offs[t], m_rows), :]
                acc_ref[...] += jnp.dot(a, w_ref[z * taps + t],
                                        preferred_element_type=jnp.float32)
        o_ref[0, pl.ds(fo * m_rows, m_rows), :] = (
            acc_ref[...] + bias).astype(o_ref.dtype)


def _conv3d_same(x, w, b, out_dtype):
    """Stride-1 'same' conv3d: tap loop inside the kernel, weights DMA'd once."""
    B, F, H, W, Cin = x.shape
    kd, kh, kw, _, Cout = w.shape
    pad = 1
    Fp, Hp, Wp = F + 2 * pad, H + 2 * pad, W + 2 * pad

    xp = jnp.pad(x.astype(ACT_DTYPE), ((0, 0), (pad, pad), (pad, pad),
                                       (pad, pad), (0, 0)))
    # flatten (Hp, Wp) -> rows, with (kw-1) extra tail rows so every shifted window
    # stays in bounds.
    xp = xp.reshape(B, Fp, Hp * Wp, Cin)
    xp = jnp.pad(xp, ((0, 0), (0, 0), (0, kw - 1), (0, 0)))
    R = Hp * Wp + (kw - 1)
    m_rows = H * Wp                       # output rows per plane (incl. W-pad cols)
    offs = tuple(dy * Wp + dx for dy in range(kh) for dx in range(kw))
    taps = kh * kw

    if Cout % 256 == 0 and Cin <= 512:
        tn = 256
    elif Cout % 128 == 0:
        tn = 128
    else:
        tn = Cout

    wmat = w.astype(ACT_DTYPE).reshape(kd * kh * kw, Cin, Cout)
    bias = b.astype(jnp.float32).reshape(1, Cout)

    kern = functools.partial(_conv3d_kernel, n_f=F, kd=kd, taps=taps, offs=offs,
                             m_rows=m_rows)
    out = pl.pallas_call(
        kern,
        out_shape=jax.ShapeDtypeStruct((B, F * m_rows, Cout), out_dtype),
        grid=(Cout // tn, B),             # B is the fastest axis -> weights reused
        in_specs=[pl.BlockSpec((1, Fp, R, Cin), lambda n, bb: (bb, 0, 0, 0)),
                  pl.BlockSpec((kd * kh * kw, Cin, tn), lambda n, bb: (0, 0, n)),
                  pl.BlockSpec((1, tn), lambda n, bb: (0, n))],
        out_specs=pl.BlockSpec((1, F * m_rows, tn), lambda n, bb: (bb, 0, n)),
        scratch_shapes=[pltpu.VMEM((m_rows, tn), jnp.float32)],
        compiler_params=pltpu.CompilerParams(
            dimension_semantics=("parallel", "parallel"),
            vmem_limit_bytes=VMEM_LIMIT),
    )(xp, wmat, bias)
    out = out.reshape(B, F, H, Wp, Cout)[:, :, :, :W, :]
    return out


def _conv3d_im2col(x, w, b, stride, padding, out_dtype):
    # TODO(synk): strided (down-sample) convs still use im2col; only 2 such layers
    # in the network and their patch tensors are tiny.
    B, F, H, W, C = x.shape
    kd, kh, kw, Cin, Cout = w.shape
    pd = ph = pw = padding
    xp = jnp.pad(x, ((0, 0), (pd, pd), (ph, ph), (pw, pw), (0, 0)))
    sd, sh, sw = stride
    Fo = (F + 2 * pd - kd) // sd + 1
    Ho = (H + 2 * ph - kh) // sh + 1
    Wo = (W + 2 * pw - kw) // sw + 1
    patches = []
    for dz in range(kd):
        for dy in range(kh):
            for dx in range(kw):
                patches.append(xp[:, dz:dz + Fo * sd:sd,
                                  dy:dy + Ho * sh:sh,
                                  dx:dx + Wo * sw:sw, :])
    p = jnp.stack(patches, axis=-2).reshape(B * Fo * Ho * Wo, kd * kh * kw * C)
    out = pallas_matmul(p, w.reshape(kd * kh * kw * Cin, Cout), b,
                        out_dtype=out_dtype)
    return out.reshape(B, Fo, Ho, Wo, Cout)


def conv3d(x, w, b, stride=(1, 1, 1), padding=1, out_dtype=None):
    """x: (B,F,H,W,Cin) channels-last; w: (kd,kh,kw,Cin,Cout); b: (Cout,)."""
    out_dtype = out_dtype or ACT_DTYPE
    B, F, H, W, Cin = x.shape
    kd, kh, kw, _, Cout = w.shape
    if kd == 1 and kh == 1 and kw == 1 and stride == (1, 1, 1):
        out = pallas_matmul(x.reshape(-1, Cin), w.reshape(Cin, Cout), b,
                            out_dtype=out_dtype)
        return out.reshape(B, F, H, W, Cout)
    if stride != (1, 1, 1):
        return _conv3d_im2col(x, w, b, stride, padding, out_dtype)
    return _conv3d_same(x, w, b, out_dtype)


# ---------------------------------------------------------------------------
# GroupNorm(32) with fused SiLU and fused per-batch channel add (timestep emb)
# ---------------------------------------------------------------------------

@functools.lru_cache(maxsize=None)
def _group_indicators(C, G):
    cg = C // G
    ind = (jnp.arange(C)[:, None] // cg == jnp.arange(G)[None, :]).astype(jnp.float32)
    return ind, jnp.asarray(ind.T)


def _group_norm_kernel(x_ref, add_ref, w_ref, b_ref, ind_ref, ind_t_ref, o_ref, *,
                       eps, do_silu, inv_n):
    x = x_ref[0].astype(jnp.float32) + add_ref[...].astype(jnp.float32)  # (S, C)
    s1 = jnp.sum(x, axis=0, keepdims=True)                               # (1, C)
    s2 = jnp.sum(x * x, axis=0, keepdims=True)
    gs1 = jnp.dot(s1, ind_ref[...], preferred_element_type=jnp.float32)  # (1, G)
    gs2 = jnp.dot(s2, ind_ref[...], preferred_element_type=jnp.float32)
    mean_g = gs1 * inv_n
    var_g = gs2 * inv_n - mean_g * mean_g
    rstd_g = lax.rsqrt(var_g + eps)
    mean_c = jnp.dot(mean_g, ind_t_ref[...], preferred_element_type=jnp.float32)
    rstd_c = jnp.dot(rstd_g, ind_t_ref[...], preferred_element_type=jnp.float32)
    y = (x - mean_c) * rstd_c * w_ref[...] + b_ref[...]
    if do_silu:
        y = y * jax.nn.sigmoid(y)
    o_ref[0] = y.astype(o_ref.dtype)


def group_norm(x, weight, bias, *, num_groups=32, eps=1e-5, do_silu=False,
               channel_add=None, out_dtype=None):
    """x: (B, S, C) channels-last; optional per-batch (B, C) add fused before stats."""
    # TODO(synk): tile over S (two-pass stats) once S*C outgrows VMEM (prod shapes).
    B, S, C = x.shape
    G = num_groups
    out_dtype = out_dtype or ACT_DTYPE
    ind, ind_t = _group_indicators(C, G)
    if channel_add is None:
        channel_add = jnp.zeros((1, C), jnp.float32)
        add_spec = pl.BlockSpec((1, C), lambda i: (0, 0))
    else:
        channel_add = channel_add.astype(jnp.float32).reshape(B, C)
        add_spec = pl.BlockSpec((1, C), lambda i: (i, 0))
    kern = functools.partial(_group_norm_kernel, eps=eps, do_silu=do_silu,
                             inv_n=1.0 / float(S * (C // G)))
    return pl.pallas_call(
        kern,
        out_shape=jax.ShapeDtypeStruct((B, S, C), out_dtype),
        grid=(B,),
        in_specs=[pl.BlockSpec((1, S, C), lambda i: (i, 0, 0)),
                  add_spec,
                  pl.BlockSpec((1, C), lambda i: (0, 0)),
                  pl.BlockSpec((1, C), lambda i: (0, 0)),
                  pl.BlockSpec((C, G), lambda i: (0, 0)),
                  pl.BlockSpec((G, C), lambda i: (0, 0))],
        out_specs=pl.BlockSpec((1, S, C), lambda i: (i, 0, 0)),
        compiler_params=pltpu.CompilerParams(
            dimension_semantics=("parallel",),
            vmem_limit_bytes=VMEM_LIMIT),
    )(x, channel_add, weight, bias, ind, ind_t)


# ---------------------------------------------------------------------------
# Head-batched QKV attention (QKVAttentionLegacy semantics)
# ---------------------------------------------------------------------------

def _attention_kernel(q_ref, k_ref, v_ref, o_ref, *, scale):
    q = q_ref[...].astype(jnp.float32) * scale          # (Hb, T, ch)
    k = k_ref[...].astype(jnp.float32) * scale
    v = v_ref[...].astype(jnp.float32)
    s = jnp.einsum('htc,hsc->hts', q, k, preferred_element_type=jnp.float32)
    s = s - jnp.max(s, axis=-1, keepdims=True)
    p = jnp.exp(s)
    p = p * pl.reciprocal(jnp.sum(p, axis=-1, keepdims=True), approx=True)
    o_ref[...] = jnp.einsum('hts,hsc->htc', p, v,
                            preferred_element_type=jnp.float32).astype(o_ref.dtype)


def pallas_attention(q, k, v, heads_per_block=8):
    """q,k,v: (B*heads, T, head_ch)."""
    # TODO(synk): flash-style K/V tiling (online softmax) needed before T grows large.
    BH, T, ch = q.shape
    Hb = min(heads_per_block, BH)
    while BH % Hb:
        Hb -= 1
    scale = 1.0 / math.sqrt(math.sqrt(ch))
    spec = pl.BlockSpec((Hb, T, ch), lambda i: (i, 0, 0))
    return pl.pallas_call(
        functools.partial(_attention_kernel, scale=scale),
        out_shape=jax.ShapeDtypeStruct((BH, T, ch), ACT_DTYPE),
        grid=(BH // Hb,),
        in_specs=[spec, spec, spec],
        out_specs=spec,
        compiler_params=pltpu.CompilerParams(
            dimension_semantics=("parallel",),
            vmem_limit_bytes=VMEM_LIMIT),
    )(q, k, v)


# ---------------------------------------------------------------------------
# Glue (plain JAX)
# ---------------------------------------------------------------------------

def silu(x):
    return x * jax.nn.sigmoid(x)


def upsample_nearest_hw(x):                      # dims=3 Upsample: (F, 2H, 2W)
    x = jnp.repeat(x, 2, axis=2)
    x = jnp.repeat(x, 2, axis=3)
    return x


def timestep_embedding(timesteps, dim, max_period=10000):
    half = dim // 2
    freqs = jnp.exp(-math.log(max_period) *
                    jnp.arange(half, dtype=jnp.float32) / half)
    args = timesteps.astype(jnp.float32)[:, None] * freqs[None]
    return jnp.concatenate([jnp.cos(args), jnp.sin(args)], axis=-1)


# ---------------------------------------------------------------------------
# UNet blocks
# ---------------------------------------------------------------------------

def res_block(x, emb, p):
    B, F, H, W, C = x.shape
    S = F * H * W
    h = group_norm(x.reshape(B, S, C), p['norm1']['w'], p['norm1']['b'],
                   do_silu=True).reshape(B, F, H, W, C)
    h = conv3d(h, p['conv1']['w'], p['conv1']['b'])
    emb_out = linear(silu(emb), p['emb'], out_dtype=jnp.float32)     # (B, Cout)
    Co = h.shape[-1]
    # emb broadcast-add fused into the second GroupNorm kernel.
    h = group_norm(h.reshape(B, S, Co), p['norm2']['w'], p['norm2']['b'],
                   do_silu=True, channel_add=emb_out).reshape(B, F, H, W, Co)
    h = conv3d(h, p['conv2']['w'], p['conv2']['b'])                  # dropout=0
    if 'skip' in p:
        x = conv3d(x, p['skip']['w'], p['skip']['b'])
    return (x + h).astype(ACT_DTYPE)


def attention_block(x, p, num_head_channels=32):
    B, F, H, W, C = x.shape
    T = F * H * W
    nh = C // num_head_channels
    ch = num_head_channels
    xs = x.reshape(B, T, C)
    hn = group_norm(xs, p['norm']['w'], p['norm']['b'], do_silu=False)
    qkv = linear(hn.reshape(B * T, C), p['qkv'])                     # (B*T, 3C)
    qkv = qkv.reshape(B, T, nh, 3, ch)
    qkv = jnp.transpose(qkv, (3, 0, 2, 1, 4)).reshape(3, B * nh, T, ch)
    a = pallas_attention(qkv[0], qkv[1], qkv[2], heads_per_block=nh)
    a = jnp.transpose(a.reshape(B, nh, T, ch), (0, 2, 1, 3)).reshape(B * T, C)
    h = linear(a, p['proj']).reshape(B, T, C)
    return (xs + h).astype(ACT_DTYPE).reshape(B, F, H, W, C)


def apply_layer(h, emb, kind, p):
    if kind == 'conv':
        return conv3d(h, p['w'], p['b'])
    if kind == 'res':
        return res_block(h, emb, p)
    if kind == 'attn':
        return attention_block(h, p)
    if kind == 'down':                              # stride (1,2,2) conv, k=3, pad=1
        return conv3d(h, p['w'], p['b'], stride=(1, 2, 2))
    if kind == 'up':                                # nearest (F,2H,2W) + conv3
        return conv3d(upsample_nearest_hw(h), p['w'], p['b'])
    raise ValueError(kind)


# ---------------------------------------------------------------------------
# Deterministic parameter construction (mirrors UNetModel.__init__)
# ---------------------------------------------------------------------------

MODEL_CHANNELS = 128
TIME_EMBED_DIM = 4 * MODEL_CHANNELS          # 512
CHANNEL_MULT = (1, 2, 4)
NUM_RES_BLOCKS = 3
ATTENTION_RESOLUTIONS = (4, 8)
NUM_HEAD_CHANNELS = 32
IN_CHANNELS = 6
OUT_CHANNELS = 3
TASK_TOKEN_CHANNELS = 512


class KeyGen:
    def __init__(self, key):
        self.key = key

    def __call__(self):
        self.key, sub = jax.random.split(self.key)
        return sub


def conv_p(kg, cin, cout, k=3):
    scale = 1.0 / math.sqrt(cin * k * k * k)
    w = jax.random.normal(kg(), (k, k, k, cin, cout), jnp.float32) * scale
    return {'w': w.astype(ACT_DTYPE), 'b': jnp.zeros((cout,), jnp.float32)}


def lin_p(kg, cin, cout):
    scale = 1.0 / math.sqrt(cin)
    w = jax.random.normal(kg(), (cin, cout), jnp.float32) * scale
    return {'w': w.astype(ACT_DTYPE), 'b': jnp.zeros((cout,), jnp.float32)}


def norm_p(c):
    return {'w': jnp.ones((1, c), jnp.float32), 'b': jnp.zeros((1, c), jnp.float32)}


def res_p(kg, cin, cout, emb_dim):
    p = {'norm1': norm_p(cin), 'conv1': conv_p(kg, cin, cout),
         'emb': lin_p(kg, emb_dim, cout),
         'norm2': norm_p(cout), 'conv2': conv_p(kg, cout, cout)}
    if cin != cout:
        p['skip'] = conv_p(kg, cin, cout, k=1)
    return p


def attn_p(kg, c):
    return {'norm': norm_p(c), 'qkv': lin_p(kg, c, 3 * c), 'proj': lin_p(kg, c, c)}


def build_unet_params(key):
    kg = KeyGen(key)
    mc, ted = MODEL_CHANNELS, TIME_EMBED_DIM
    params = {
        'time_embed': [lin_p(kg, mc, ted), lin_p(kg, ted, ted)],
        'task_embed': [lin_p(kg, TASK_TOKEN_CHANNELS, ted), lin_p(kg, ted, ted)],
    }
    input_blocks = [[('conv', conv_p(kg, IN_CHANNELS, mc))]]
    ch = mc
    input_block_chans = [mc]
    ds = 1
    for level, mult in enumerate(CHANNEL_MULT):
        for _ in range(NUM_RES_BLOCKS):
            layers = [('res', res_p(kg, ch, mult * mc, ted))]
            ch = mult * mc
            if ds in ATTENTION_RESOLUTIONS:
                layers.append(('attn', attn_p(kg, ch)))
            input_blocks.append(layers)
            input_block_chans.append(ch)
        if level != len(CHANNEL_MULT) - 1:
            input_blocks.append([('down', conv_p(kg, ch, ch))])
            input_block_chans.append(ch)
            ds *= 2
    params['input_blocks'] = input_blocks
    params['middle'] = [('res', res_p(kg, ch, ch, ted)),
                        ('attn', attn_p(kg, ch)),
                        ('res', res_p(kg, ch, ch, ted))]
    output_blocks = []
    for level, mult in list(enumerate(CHANNEL_MULT))[::-1]:
        for i in range(NUM_RES_BLOCKS + 1):
            ich = input_block_chans.pop()
            layers = [('res', res_p(kg, ch + ich, mc * mult, ted))]
            ch = mc * mult
            if ds in ATTENTION_RESOLUTIONS:
                layers.append(('attn', attn_p(kg, ch)))
            if level and i == NUM_RES_BLOCKS:
                layers.append(('up', conv_p(kg, ch, ch)))
                ds //= 2
            output_blocks.append(layers)
    params['output_blocks'] = output_blocks
    # NOTE: guided_diffusion zero-inits some convs (zero_module); here all weights are
    # deterministic small randoms so every code path actually computes something.
    params['out_norm'] = norm_p(mc)
    params['out_conv'] = conv_p(kg, mc, OUT_CHANNELS)
    return params


# ---------------------------------------------------------------------------
# UNetModel forward (dims=3) and UnetThor wrapper
# ---------------------------------------------------------------------------

def unet_forward(params, x_ncdhw, t, task_embed):
    # x_ncdhw: (B, 6, F, H, W)  ->  channels-last (B, F, H, W, 6), bf16 activations
    x = jnp.transpose(x_ncdhw, (0, 2, 3, 4, 1)).astype(ACT_DTYPE)
    B = x.shape[0]

    emb = linear(timestep_embedding(t, MODEL_CHANNELS), params['time_embed'][0],
                 out_dtype=jnp.float32)
    emb = silu(emb)
    emb = linear(emb, params['time_embed'][1], out_dtype=jnp.float32)

    if task_embed is not None:
        # TODO(synk): exact flowdiffusion task-token pooling (attention pool / order of
        # pool vs MLP) not reproduced from source; using mean-pool + MLP into time emb.
        te = jnp.mean(task_embed.astype(jnp.float32), axis=1)          # (B, 512)
        te = linear(te, params['task_embed'][0], out_dtype=jnp.float32)
        te = silu(te)
        te = linear(te, params['task_embed'][1], out_dtype=jnp.float32)
        emb = emb + te

    hs = []
    h = x
    for block in params['input_blocks']:
        for kind, p in block:
            h = apply_layer(h, emb, kind, p)
        hs.append(h)
    for kind, p in params['middle']:
        h = apply_layer(h, emb, kind, p)
    for block in params['output_blocks']:
        h = jnp.concatenate([h, hs.pop()], axis=-1)
        for kind, p in block:
            h = apply_layer(h, emb, kind, p)

    Bh, F, H, W, C = h.shape
    h = group_norm(h.reshape(B, F * H * W, C),
                   params['out_norm']['w'], params['out_norm']['b'],
                   do_silu=True).reshape(B, F, H, W, C)
    h = conv3d(h, params['out_conv']['w'], params['out_conv']['b'],
               out_dtype=jnp.float32)
    return jnp.transpose(h, (0, 4, 1, 2, 3))                 # (B, 3, F, H, W)


def unet_thor_forward(params, x, t, task_embed=None):
    """x: (B, (f+1)*3, H, W) NCHW -> (B, f*3, H, W)."""
    B, C, H, W = x.shape
    f = C // 3 - 1
    x_cond = jnp.broadcast_to(x[:, -3:][:, :, None], (B, 3, f, H, W))
    xm = x[:, :-3].reshape(B, f, 3, H, W).transpose(0, 2, 1, 3, 4)    # (B,3,f,H,W)
    xin = jnp.concatenate([xm, x_cond], axis=1)                       # (B,6,f,H,W)
    out = unet_forward(params, xin, t, task_embed)                    # (B,3,f,H,W)
    return out.transpose(0, 2, 1, 3, 4).reshape(B, f * 3, H, W)


# ---------------------------------------------------------------------------

if __name__ == "__main__":
    key = jax.random.PRNGKey(0)
    kp, kx, ke = jax.random.split(key, 3)
    params = build_unet_params(kp)

    B, f, H, W = 2, 2, 16, 16
    x = jax.random.normal(kx, (B, (f + 1) * 3, H, W), jnp.float32)
    t = jnp.array([3.0, 17.0], dtype=jnp.float32)
    task_embed = jax.random.normal(ke, (B, 8, TASK_TOKEN_CHANNELS), jnp.float32)

    out = unet_thor_forward(params, x, t, task_embed)
    out = jax.block_until_ready(out)
    assert out.shape == (B, f * 3, H, W), out.shape
    assert bool(jnp.all(jnp.isfinite(out.astype(jnp.float32))))
    print("KERNEL_OK")
</pallas_src>

<mosaic_0001>
module attributes {stable_mosaic.version = 11 : i64} {
  func.func @_matmul_kernel(%arg0: i32, %arg1: i32, %arg2: i32, %arg3: memref<2x128xbf16, #tpu.memory_space<vmem>>, %arg4: memref<128x256xbf16, #tpu.memory_space<vmem>>, %arg5: memref<1x256xf32, #tpu.memory_space<vmem>>, %arg6: memref<2x256xf32, #tpu.memory_space<vmem>>, %arg7: memref<2x256xf32, #tpu.memory_space<vmem>>) attributes {dimension_semantics = [#tpu.dimension_semantics<parallel>, #tpu.dimension_semantics<parallel>, #tpu.dimension_semantics<arbitrary>], iteration_bounds = array<i64: 1, 2, 1>, scalar_prefetch = 0 : i64, scratch_operands = 1 : i64, tpu.core_type = #tpu.core_type<tc>, window_params = [{transform_indices = @transform_0, window_bounds = array<i64: 2, 128>}, {transform_indices = @transform_1, window_bounds = array<i64: 128, 256>}, {transform_indices = @transform_2, window_bounds = array<i64: 1, 256>}, {transform_indices = @transform_3, window_bounds = array<i64: 2, 256>}]} {
    %c0_i32 = arith.constant 0 : i32
    %0 = arith.cmpi eq, %arg2, %c0_i32 : i32
    %1 = arith.extui %0 : i1 to i32
    %c0_i32_0 = arith.constant 0 : i32
    %2 = arith.cmpi ne, %1, %c0_i32_0 : i32
    scf.if %2 {
      %cst_10 = arith.constant 0.000000e+00 : f32
      %12 = vector.broadcast %cst_10 : f32 to vector<2x256xf32>
      %c0_11 = arith.constant 0 : index
      %c0_12 = arith.constant 0 : index
      %13 = vector.load %arg7[%c0_11, %c0_12] : memref<2x256xf32, #tpu.memory_space<vmem>>, vector<2x256xf32>
      tpu.vector_store %arg7[%c0_11, %c0_12], %12 {strides = array<i32>} : memref<2x256xf32, #tpu.memory_space<vmem>>, vector<2x256xf32>,
    } else {
    }
    %c0 = arith.constant 0 : index
    %c0_1 = arith.constant 0 : index
    %3 = vector.load %arg7[%c0, %c0_1] : memref<2x256xf32, #tpu.memory_space<vmem>>, vector<2x256xf32>
    %c0_2 = arith.constant 0 : index
    %c0_3 = arith.constant 0 : index
    %4 = vector.load %arg3[%c0_2, %c0_3] : memref<2x128xbf16, #tpu.memory_space<vmem>>, vector<2x128xbf16>
    %c0_4 = arith.constant 0 : index
    %c0_5 = arith.constant 0 : index
    %5 = vector.load %arg4[%c0_4, %c0_5] : memref<128x256xbf16, #tpu.memory_space<vmem>>, vector<128x256xbf16>
    %cst = arith.constant dense<0.000000e+00> : vector<2x256xf32>
    %6 = tpu.matmul %4, %5, %cst {dimension_numbers = #tpu.dot_dimension_numbers<[1], [0], [0], [1], [0, 0, 1, 1], [], []>} : vector<2x128xbf16>, vector<128x256xbf16>, vector<2x256xf32> -> vector<2x256xf32>
    %7 = arith.addf %3, %6 : vector<2x256xf32>
    %c0_6 = arith.constant 0 : index
    %c0_7 = arith.constant 0 : index
    %8 = vector.load %arg7[%c0_6, %c0_7] : memref<2x256xf32, #tpu.memory_space<vmem>>, vector<2x256xf32>
    tpu.vector_store %arg7[%c0_6, %c0_7], %7 {strides = array<i32>} : memref<2x256xf32, #tpu.memory_space<vmem>>, vector<2x256xf32>,
    %c0_i32_8 = arith.constant 0 : i32
    %9 = arith.cmpi eq, %arg2, %c0_i32_8 : i32
    %10 = arith.extui %9 : i1 to i32
    %c0_i32_9 = arith.constant 0 : i32
    %11 = arith.cmpi ne, %10, %c0_i32_9 : i32
    scf.if %11 {
      %c0_10 = arith.constant 0 : index
      %c0_11 = arith.constant 0 : index
      %12 = vector.load %arg7[%c0_10, %c0_11] : memref<2x256xf32, #tpu.memory_space<vmem>>, vector<2x256xf32>
      %c0_12 = arith.constant 0 : index
      %c0_13 = arith.constant 0 : index
      %13 = vector.load %arg5[%c0_12, %c0_13] : memref<1x256xf32, #tpu.memory_space<vmem>>, vector<1x256xf32>
      %14 = vector.broadcast %13 : vector<1x256xf32> to vector<2x256xf32>
      %15 = arith.addf %12, %14 : vector<2x256xf32>
      %c0_14 = arith.constant 0 : index
      %c0_15 = arith.constant 0 : index
      %16 = vector.load %arg6[%c0_14, %c0_15] : memref<2x256xf32, #tpu.memory_space<vmem>>, vector<2x256xf32>
      tpu.vector_store %arg6[%c0_14, %c0_15], %15 {strides = array<i32>} : memref<2x256xf32, #tpu.memory_space<vmem>>, vector<2x256xf32>,
    } else {
    }
    return
  }
  func.func @transform_0(%arg0: i32, %arg1: i32, %arg2: i32) -> (i32, i32) {
    %c0_i32 = arith.constant 0 : i32
    return %arg0, %arg2 : i32, i32
  }
  func.func @transform_1(%arg0: i32, %arg1: i32, %arg2: i32) -> (i32, i32) {
    %c0_i32 = arith.constant 0 : i32
    return %arg2, %arg1 : i32, i32
  }
  func.func @transform_2(%arg0: i32, %arg1: i32, %arg2: i32) -> (i32, i32) {
    %c0_i32 = arith.constant 0 : i32
    %c0_i32_0 = arith.constant 0 : i32
    return %c0_i32, %arg1 : i32, i32
  }
  func.func @transform_3(%arg0: i32, %arg1: i32, %arg2: i32) -> (i32, i32) {
    %c0_i32 = arith.constant 0 : i32
    return %arg0, %arg1 : i32, i32
  }
}

</mosaic_0001>

<llo_original>
// kernel: tpu_custom_call.1
$region0: #{tpu_custom_call.1}
  #allocation0 [shape = 'u32[]', space=smem, size = 0x4, offset = 0x4, fixed_abs, tag = 'smem constant byte address 0x4 - core index']
  #allocation1 [shape = 'u32[144,128]{1,0:T(1,128)}', space=vmem, size = 0x12000, scoped, tag = 'internal scratch']
  #allocation2 [shape = 'f32[2,256]{1,0:T(2,128)}', space=vmem, size = 0x800, scoped, tag = 'scratch operand']
  %s0 = inlined_call_operand.hbm [shape: bf16[2,128], index: 0, kind: input, shape index: {}]
  %s1 = inlined_call_operand.hbm [shape: bf16[128,512], index: 1, kind: input, shape index: {}]
  %s2 = inlined_call_operand.vmem [shape: f32[1,512], index: 2, kind: input, shape index: {}]
  %s3 = inlined_call_operand.hbm [shape: f32[2,512], index: 3, kind: output, shape index: {}]
  %s4 = sld [smem:[#allocation0]]
  $region61: #{tpu_custom_call.1} parent=0
    _
  %s6 = ssub.s32 1, %s4
  %s7 = scalar_select 0, %s6, %s4
  $region1: #{tpu_custom_call.1} parent=0
    #allocation3 [shape = 'u8[512]{0}', space=vmem, size = 0x400, scoped, tag = 'input window, operand 0, single buffered']
    #allocation4 [shape = 's32[2]{0}', space=sflag, size = 0x8, scoped, tag = 'scoped memory for tpu_custom_call.1']
    #allocation5 [shape = 's32[2]{0}', space=sflag, size = 0x8, scoped, tag = 'scoped memory for tpu_custom_call.1']
    #allocation6 [shape = 'u8[131072]{0}', space=vmem, size = 0x20000, scoped, tag = 'input window, operand 1']
    #allocation7 [shape = 's32[2]{0}', space=sflag, size = 0x8, scoped, tag = 'scoped memory for tpu_custom_call.1']
    #allocation8 [shape = 'u8[4096]{0}', space=vmem, size = 0x1000, scoped, tag = 'output window, operand 0']
    %8 = vsyncpa [#allocation4], 0
    %9 = vsyncpa [#allocation7], 0
    %s10 = scalar_lea.sflag [#allocation7], 1
    %11 = vsyncpa %s10, 0
    %12 = vsyncpa [#allocation5], 0
    %s13 = scalar_lea.sflag [#allocation5], 1
    %14 = vsyncpa %s13, 0
    loop: start=0, step=1, limit=4
    $region2: #{tpu_custom_call.1} parent=1 // loop_pre_header
      _
    $region3: #{tpu_custom_call.1} parent=1 // loop_header
      %s16 = sphi 0, %s20
      %p17 = scmp.ge.s32.totalorder %s16, 4
      %s23 = sphi 0, %s42
      %s24 = sphi 0, %s38
      %s25 = sphi 0, %s34
      %s26 = sphi 0, %s23
      %s27 = sphi 0, %s24
      %s28 = sphi 0, %s25
      %s29 = sphi 0, %s26
      %s30 = sphi 0, %s27
      %s31 = sphi 0, %s28
      %s47 = sphi 0, %s49
      %s50 = sphi 0, %s47
      %s51 = sphi 0, %s50
      %s67 = sphi 0, %s51
      %s75 = sphi 0, %s77
      %s78 = sphi 0, %s75
      %s79 = sphi 0, %s78
      %s95 = sphi 0, %s79
      %s101 = sphi 0, %s103
      %s104 = sphi 0, %s101
      %s105 = sphi 0, %s104
      %s121 = sphi 0, %s105
      %s129 = sphi 0, %s131
      %s132 = sphi 0, %s129
      %s133 = sphi 0, %s132
      %s149 = sphi 0, %s133
    $region4: #{tpu_custom_call.1} parent=1 // loop_header_branch
      %19 = sbr.rel (%p17) target = $region8
    $region5: #{tpu_custom_call.1} parent=1 // loop_body
      %s21 = ssub.s32 %s16, 1
      %s22 = ssub.s32 %s16, 2
      %s32 = sadd.s32 1, %s25
      %p33 = scmp.ge.s32.totalorder %s32, 1
      %s34 = scalar_select %p33, 0, %s32
      %s35 = sadd.s32 1, %s24
      %s36 = scalar_select %p33, %s35, %s24
      %p37 = scmp.ge.s32.totalorder %s36, 2
      %s38 = scalar_select %p37, 0, %s36
      %s39 = sadd.s32 1, %s23
      %s40 = scalar_select %p37, %s39, %s23
      %p41 = scmp.ge.s32.totalorder %s40, 1
      %s42 = scalar_select %p41, 0, %s40
      %s43 = ssub.s32 %s23, %s42
      %s44 = ssub.s32 %s25, %s34
      %s45 = sor.u32 %s43, %s44
      %p46 = scmp.eq.s32.totalorder %s45, 0
      %s48 = sadd.s32 %s47, 1
      %s49 = scalar_select %p46, %s47, %s48
      %p52 = pneg %p46
      %p53 = scmp.eq.s32.totalorder %s16, 1
      %p54 = por %p52, %p53
      %p55 = scmp.ne.s32.totalorder %s47, %s50
      %p56 = scmp.eq.s32.totalorder %s16, 0
      %p57 = por %p55, %p56
      %p58 = scmp.ne.s32.totalorder %s47, %s50
      %p59 = scmp.eq.s32.totalorder %s21, 1
      %p60 = por %p58, %p59
      %p61 = scmp.ne.s32.totalorder %s50, %s51
      %p62 = scmp.eq.s32.totalorder %s21, 0
      %p63 = por %p61, %p62
      %p64 = scmp.ne.s32.totalorder %s50, %s51
      %p65 = scmp.eq.s32.totalorder %s22, 1
      %p66 = por %p64, %p65
      %p68 = scmp.ne.s32.totalorder %s51, %s67
      %p69 = scmp.eq.s32.totalorder %s22, 0
      %p70 = por %p68, %p69
      %s71 = ssub.s32 %s25, %s34
      %s72 = ssub.s32 %s24, %s38
      %s73 = sor.u32 %s71, %s72
      %p74 = scmp.eq.s32.totalorder %s73, 0
      %s76 = sadd.s32 %s75, 1
      %s77 = scalar_select %p74, %s75, %s76
      %p80 = pneg %p74
      %p81 = scmp.eq.s32.totalorder %s16, 1
      %p82 = por %p80, %p81
      %p83 = scmp.ne.s32.totalorder %s75, %s78
      %p84 = scmp.eq.s32.totalorder %s16, 0
      %p85 = por %p83, %p84
      %p86 = scmp.ne.s32.totalorder %s75, %s78
      %p87 = scmp.eq.s32.totalorder %s21, 1
      %p88 = por %p86, %p87
      %p89 = scmp.ne.s32.totalorder %s78, %s79
      %p90 = scmp.eq.s32.totalorder %s21, 0
      %p91 = por %p89, %p90
      %p92 = scmp.ne.s32.totalorder %s78, %s79
      %p93 = scmp.eq.s32.totalorder %s22, 1
      %p94 = por %p92, %p93
      %p96 = scmp.ne.s32.totalorder %s79, %s95
      %p97 = scmp.eq.s32.totalorder %s22, 0
      %p98 = por %p96, %p97
      %s99 = ssub.s32 %s24, %s38
      %p100 = scmp.eq.s32.totalorder %s99, 0
      %s102 = sadd.s32 %s101, 1
      %s103 = scalar_select %p100, %s101, %s102
      %p106 = pneg %p100
      %p107 = scmp.eq.s32.totalorder %s16, 1
      %p108 = por %p106, %p107
      %p109 = scmp.ne.s32.totalorder %s101, %s104
      %p110 = scmp.eq.s32.totalorder %s16, 0
      %p111 = por %p109, %p110
      %p112 = scmp.ne.s32.totalorder %s101, %s104
      %p113 = scmp.eq.s32.totalorder %s21, 1
      %p114 = por %p112, %p113
      %p115 = scmp.ne.s32.totalorder %s104, %s105
      %p116 = scmp.eq.s32.totalorder %s21, 0
      %p117 = por %p115, %p116
      %p118 = scmp.ne.s32.totalorder %s104, %s105
      %p119 = scmp.eq.s32.totalorder %s22, 1
      %p120 = por %p118, %p119
      %p122 = scmp.ne.s32.totalorder %s105, %s121
      %p123 = scmp.eq.s32.totalorder %s22, 0
      %p124 = por %p122, %p123
      %s125 = ssub.s32 %s23, %s42
      %s126 = ssub.s32 %s24, %s38
      %s127 = sor.u32 %s125, %s126
      %p128 = scmp.eq.s32.totalorder %s127, 0
      %s130 = sadd.s32 %s129, 1
      %s131 = scalar_select %p128, %s129, %s130
      %p134 = pneg %p128
      %p135 = scmp.eq.s32.totalorder %s16, 1
      %p136 = por %p134, %p135
      %p137 = scmp.ne.s32.totalorder %s129, %s132
      %p138 = scmp.eq.s32.totalorder %s16, 0
      %p139 = por %p137, %p138
      %p140 = scmp.ne.s32.totalorder %s129, %s132
      %p141 = scmp.eq.s32.totalorder %s21, 1
      %p142 = por %p140, %p141
      %p143 = scmp.ne.s32.totalorder %s132, %s133
      %p144 = scmp.eq.s32.totalorder %s21, 0
      %p145 = por %p143, %p144
      %p146 = scmp.ne.s32.totalorder %s132, %s133
      %p147 = scmp.eq.s32.totalorder %s22, 1
      %p148 = por %p146, %p147
      %p150 = scmp.ne.s32.totalorder %s133, %s149
      %p151 = scmp.eq.s32.totalorder %s22, 0
      %p152 = por %p150, %p151
      %p153 = scmp.le.s32.totalorder 1, %s16
      %p154 = scmp.lt.s32.totalorder %s16, 3
      %p155 = pnand %p153, %p154
      %p156 = pneg %p155
      // Predicated region
      $region9: #{tpu_custom_call.1} parent=5 // pred_check
        _
      $region10: #{tpu_custom_call.1} parent=5 // pred_check_branch
        %158 = sbr.rel (%p155) target = $region12
      $region11: #{tpu_custom_call.1} parent=5 // pred_region
        %s159 = ssub.s32 %s16, 1
        // Predicated region
        $region13: #{tpu_custom_call.1} parent=11 // pred_check
          %p160 = pneg %p63
        $region14: #{tpu_custom_call.1} parent=11 // pred_check_branch
          %162 = sbr.rel (%p160) target = $region16
        $region15: #{tpu_custom_call.1} parent=11 // pred_region
          %s164 = ssub.s32 16, 16
          %165 = vsyncadd [#allocation4], %s164
          %s166 = sadd.s32 %s28, %s26
          %s167 = smul.addr %s166, 16
          %s168 = scalar_lea.hbm %s0, %s167
          %s170 = sshll.u32 [#allocation3], 4
          %s171 = int_to_ptr.vmem [resolvable:$true] %s170
          %173 = dma.hbm_to_vmem [thread:$0]  %s168, 16, %s171, [#allocation4]
        $region16: #{tpu_custom_call.1} parent=11 // pred_fallthru
          _
      $region12: #{tpu_custom_call.1} parent=5 // pred_fallthru
        _
      %p174 = scmp.lt.s32.totalorder %s16, 2
      // Predicated region
      $region17: #{tpu_custom_call.1} parent=5 // pred_check
        %p175 = pneg %p174
      $region18: #{tpu_custom_call.1} parent=5 // pred_check_branch
        %177 = sbr.rel (%p175) target = $region20
      $region19: #{tpu_custom_call.1} parent=5 // pred_region
        // Predicated region
        $region21: #{tpu_custom_call.1} parent=19 // pred_check
          %p178 = pneg %p85
        $region22: #{tpu_custom_call.1} parent=19 // pred_check_branch
          %180 = sbr.rel (%p178) target = $region24
        $region23: #{tpu_custom_call.1} parent=19 // pred_region
          %s181 = sand.u32 %s75, 1
          %s182 = scalar_lea.sflag [#allocation7], %s181
          %s183 = sand.u32 %s75, 1
          %s184 = smul.addr %s183, 128
          %s185 = scalar_lea.vmem [#allocation6], %s184
          %s186 = smul.u32 16, %s25
          %s187 = smul.u32 2, %s24
          %s189 = ssub.s32 2048, 2048
          %190 = vsyncadd %s182, %s189
          %s191 = smul.addr %s186, 4
          %s192 = sadd.s32 %s187, %s191
          %s193 = smul.addr %s192, 64
          %s194 = scalar_lea.hbm %s1, %s193
          %s195 = sshll.u32 %s185, 4
          %s196 = int_to_ptr.vmem [resolvable:$true] %s195
          %201 = dma.hbm_to_vmem [thread:$0]  %s194, 2048, %s196, %s182, 256, 128, 8
        $region24: #{tpu_custom_call.1} parent=19 // pred_fallthru
          _
        // Predicated region
        $region25: #{tpu_custom_call.1} parent=19 // pred_check
          %p202 = pneg %p111
        $region26: #{tpu_custom_call.1} parent=19 // pred_check_branch
          %204 = sbr.rel (%p202) target = $region28
        $region27: #{tpu_custom_call.1} parent=19 // pred_region
          %s205 = smul.u32 2, %s24
          %p206 = scmp.lt.s32.totalorder %s205, 3
          %s207 = scalar_select %p206, %s205, 3
          %s208 = scalar_lea.vmem %s2, %s207
          %s209 = smul.u32 2, %s24
        $region28: #{tpu_custom_call.1} parent=19 // pred_fallthru
          _
      $region20: #{tpu_custom_call.1} parent=5 // pred_fallthru
        _
      %p210 = scmp.le.s32.totalorder 1, %s16
      %p211 = scmp.lt.s32.totalorder %s16, 3
      %p212 = pnand %p210, %p211
      %p213 = pneg %p212
      // Predicated region
      $region29: #{tpu_custom_call.1} parent=5 // pred_check
        _
      $region30: #{tpu_custom_call.1} parent=5 // pred_check_branch
        %215 = sbr.rel (%p212) target = $region32
      $region31: #{tpu_custom_call.1} parent=5 // pred_region
        %s216 = ssub.s32 %s16, 1
        // Predicated region
        $region33: #{tpu_custom_call.1} parent=31 // pred_check
          %p217 = pneg %p63
        $region34: #{tpu_custom_call.1} parent=31 // pred_check_branch
          %219 = sbr.rel (%p217) target = $region36
        $region35: #{tpu_custom_call.1} parent=31 // pred_region
          %220 = dma.done [#allocation4], 16
        $region36: #{tpu_custom_call.1} parent=31 // pred_fallthru
          _
        %s221 = sand.u32 %s78, 1
        %s222 = scalar_lea.sflag [#allocation7], %s221
        %s223 = sand.u32 %s78, 1
        %s224 = smul.addr %s223, 128
        %s225 = scalar_lea.vmem [#allocation6], %s224
        // Predicated region
        $region37: #{tpu_custom_call.1} parent=31 // pred_check
          %p226 = pneg %p91
        $region38: #{tpu_custom_call.1} parent=31 // pred_check_branch
          %228 = sbr.rel (%p226) target = $region40
        $region39: #{tpu_custom_call.1} parent=31 // pred_region
          %229 = dma.done %s222, 2048
        $region40: #{tpu_custom_call.1} parent=31 // pred_fallthru
          _
        %p230 = pneg %p63
        %p231 = pneg %p60
        %s232 = sand.u32 %s78, 1
        %s233 = scalar_lea.sflag [#allocation7], %s232
        %s234 = sand.u32 %s78, 1
        %s235 = smul.addr %s234, 128
        %s236 = scalar_lea.vmem [#allocation6], %s235
        %p237 = pneg %p91
        %p238 = pneg %p88
        %s239 = smul.u32 2, %s27
        %p240 = scmp.lt.s32.totalorder %s239, 3
        %s241 = scalar_select %p240, %s239, 3
        %s242 = scalar_lea.vmem %s2, %s241
        %p243 = pneg %p117
        %p244 = pneg %p114
        %p245 = pneg %p145
        %p246 = pneg %p142
        %s247 = sand.u32 %s132, 1
        %s248 = scalar_lea.sflag [#allocation5], %s247
        %s249 = sand.u32 %s132, 1
        %s250 = smul.addr %s249, 4
        %s251 = scalar_lea.vmem [#allocation8], %s250
        %s252 = smul.u32 16, %s28
        %s253 = smul.u32 2, %s27
        %s254 = smul.u32 2, %s27
        %p255 = scmp.lt.s32.totalorder %s254, 3
        %s256 = scalar_select %p255, %s254, 3
        %s257 = scalar_lea.vmem %s2, %s256
        %s258 = smul.u32 2, %s27
        %s259 = smul.u32 2, %s27
        %p261 = scmp.eq.s32.totalorder %s28, 0
        // Predicated region
        $region41: #{tpu_custom_call.1} parent=31 // pred_check
          %p262 = pneg %p261
        $region42: #{tpu_custom_call.1} parent=31 // pred_check_branch
          %264 = sbr.rel (%p262) target = $region44
        $region43: #{tpu_custom_call.1} parent=31 // pred_region
          %265 = vst [vmem:[#allocation2] sm:$0xf] 0.0
        $region44: #{tpu_custom_call.1} parent=31 // pred_fallthru
          _
        %v266 = vld [vmem:[#allocation2] sm:$0xf]
        %v267 = vld [vmem:[#allocation3] sm:$0x1]
        %v268 = vld [vmem:[%s225] sm:$0xff]
        %v269 = vld [vmem:[%s225 + $0x8] sm:$0xff]
        %v270 = vld [vmem:[%s225 + $0x10] sm:$0xff]
        %v271 = vld [vmem:[%s225 + $0x18] sm:$0xff]
        %v272 = vld [vmem:[%s225 + $0x20] sm:$0xff]
        %v273 = vld [vmem:[%s225 + $0x28] sm:$0xff]
        %v274 = vld [vmem:[%s225 + $0x30] sm:$0xff]
        %v275 = vld [vmem:[%s225 + $0x38] sm:$0xff]
        %v276 = vld [vmem:[%s225 + $0x40] sm:$0xff]
        %v277 = vld [vmem:[%s225 + $0x48] sm:$0xff]
        %v278 = vld [vmem:[%s225 + $0x50] sm:$0xff]
        %v279 = vld [vmem:[%s225 + $0x58] sm:$0xff]
        %v280 = vld [vmem:[%s225 + $0x60] sm:$0xff]
        %v281 = vld [vmem:[%s225 + $0x68] sm:$0xff]
        %v282 = vld [vmem:[%s225 + $0x70] sm:$0xff]
        %v283 = vld [vmem:[%s225 + $0x78] sm:$0xff]
        %v300 = vunpack.c.l.b16 %v268
        %v301 = vunpack.c.h.b16 %v268
        %v302 = vunpack.c.l.b16 %v269
        %v303 = vunpack.c.h.b16 %v269
        %v304 = vunpack.c.l.b16 %v270
        %v305 = vunpack.c.h.b16 %v270
        %v306 = vunpack.c.l.b16 %v271
        %v307 = vunpack.c.h.b16 %v271
        %v308 = vunpack.c.l.b16 %v272
        %v309 = vunpack.c.h.b16 %v272
        %v310 = vunpack.c.l.b16 %v273
        %v311 = vunpack.c.h.b16 %v273
        %v312 = vunpack.c.l.b16 %v274
        %v313 = vunpack.c.h.b16 %v274
        %v314 = vunpack.c.l.b16 %v275
        %v315 = vunpack.c.h.b16 %v275
        %v316 = vunpack.c.l.b16 %v276
        %v317 = vunpack.c.h.b16 %v276
        %v318 = vunpack.c.l.b16 %v277
        %v319 = vunpack.c.h.b16 %v277
        %v320 = vunpack.c.l.b16 %v278
        %v321 = vunpack.c.h.b16 %v278
        %v322 = vunpack.c.l.b16 %v279
        %v323 = vunpack.c.h.b16 %v279
        %v324 = vunpack.c.l.b16 %v280
        %v325 = vunpack.c.h.b16 %v280
        %v326 = vunpack.c.l.b16 %v281
        %v327 = vunpack.c.h.b16 %v281
        %v328 = vunpack.c.l.b16 %v282
        %v329 = vunpack.c.h.b16 %v282
        %v330 = vunpack.c.l.b16 %v283
        %v331 = vunpack.c.h.b16 %v283
        %v332 = vpack.c.b16 %v302, %v300
        %v333 = vpack.c.b16 %v303, %v301
        %v334 = vpack.c.b16 %v306, %v304
        %v335 = vpack.c.b16 %v307, %v305
        %v336 = vpack.c.b16 %v310, %v308
        %v337 = vpack.c.b16 %v311, %v309
        %v338 = vpack.c.b16 %v314, %v312
        %v339 = vpack.c.b16 %v315, %v313
        %v340 = vpack.c.b16 %v318, %v316
        %v341 = vpack.c.b16 %v319, %v317
        %v342 = vpack.c.b16 %v322, %v320
        %v343 = vpack.c.b16 %v323, %v321
        %v344 = vpack.c.b16 %v326, %v324
        %v345 = vpack.c.b16 %v327, %v325
        %v346 = vpack.c.b16 %v330, %v328
        %v347 = vpack.c.b16 %v331, %v329
        %364 = vmatprep.subr.bf16.mxu0 %v333
        %365 = vmatpush1.bf16.msra.mxu0 %v332
        %366 = vmatprep.subr.bf16.mxu0 %v335
        %367 = vmatpush1.bf16.msra.mxu0 %v334
        %368 = vmatprep.subr.bf16.mxu0 %v337
        %369 = vmatpush1.bf16.msra.mxu0 %v336
        %370 = vmatprep.subr.bf16.mxu0 %v339
        %371 = vmatpush1.bf16.msra.mxu0 %v338
        %372 = vmatprep.subr.bf16.mxu0 %v341
        %373 = vmatpush1.bf16.msra.mxu0 %v340
        %374 = vmatprep.subr.bf16.mxu0 %v343
        %375 = vmatpush1.bf16.msra.mxu0 %v342
        %376 = vmatprep.subr.bf16.mxu0 %v345
        %377 = vmatpush1.bf16.msra.mxu0 %v344
        %378 = vmatprep.subr.bf16.mxu0 %v347
        %379 = vmatpush1.bf16.msra.mxu0 %v346
        %380 = vmatprep.subr.bf16.mxu0 0
        %381 = vmatpush1.bf16.msra.mxu0 0
        %382 = vmatprep.subr.bf16.mxu0 0
        %383 = vmatpush1.bf16.msra.mxu0 0
        %384 = vmatprep.subr.bf16.mxu0 0
        %385 = vmatpush1.bf16.msra.mxu0 0
        %386 = vmatprep.subr.bf16.mxu0 0
        %387 = vmatpush1.bf16.msra.mxu0 0
        %388 = vmatprep.subr.bf16.mxu0 0
        %389 = vmatpush1.bf16.msra.mxu0 0
        %390 = vmatprep.subr.bf16.mxu0 0
        %391 = vmatpush1.bf16.msra.mxu0 0
        %392 = vmatprep.subr.bf16.mxu0 0
        %393 = vmatpush1.bf16.msra.mxu0 0
        %394 = vmatprep.subr.bf16.mxu0 0
        %395 = vmatpush1.bf16.msra.mxu0 0
        %396 = vmatprep.mubr.bf16.mxu0 0
        %397 = vmatmul.mubr.bf16.gmra.mrb[0].mxu0 %v267
        %v398 = vpop.f32.mrb[0].mxu0
        %v399 = vadd.f32 0.0, %v398
        %v400 = vpop.f32.mrb[0].mxu0
        %v401 = vadd.f32 0.0, %v400
        %v402 = vpop.f32.mrb[0].mxu0
        %v403 = vpop.f32.mrb[0].mxu0
        %404 = vdwg.mxu0
        %v407 = vcombine.low %v399, %v401
        %v409 = vunpack.c.l.s4 1983009808
        %v410 = vunpack.c.0.s8 %v409
        %v411 = vlaneseq
        %v412 = vshrl.u32 %v411, 7
        %v413 = vsub.s32 %v410, %v412
        %v414 = vrot.slane %v407, %v413
        %v416 = vadd.f32 %v266, %v414
        %417 = vst [vmem:[#allocation2] sm:$0xf] %v416
        // Predicated region
        $region45: #{tpu_custom_call.1} parent=31 // pred_check
          %p418 = pneg %p261
        $region46: #{tpu_custom_call.1} parent=31 // pred_check_branch
          %420 = sbr.rel (%p418) target = $region48
        $region47: #{tpu_custom_call.1} parent=31 // pred_region
          %v421 = vld [vmem:[#allocation2] sm:$0xf]
          %v422 = vld [vmem:[%s257] sm:$0x3]
          %v424 = vlaneseq
          %v425 = vshrl.u32 %v424, 7
          %v426 = vsub.s32 0, %v425
          %v427 = vrot.slane %v422, %v426
          %v428 = vlaneseq
          %v429 = vshrl.u32 %v428, 7
          %v430 = vsub.s32 1, %v429
          %v431 = vrot.slane %v422, %v430
          %v432 = vcombine.low %v427, %v431
          %v434 = vunpack.c.l.s4 1983009808
          %v435 = vunpack.c.0.s8 %v434
          %v436 = vlaneseq
          %v437 = vshrl.u32 %v436, 7
          %v438 = vsub.s32 %v435, %v437
          %v439 = vrot.slane %v432, %v438
          %v441 = vadd.f32 %v421, %v439
          %442 = vst [vmem:[%s251] sm:$0xf] %v441
        $region48: #{tpu_custom_call.1} parent=31 // pred_fallthru
          _
        %s443 = sand.u32 %s132, 1
        %s444 = scalar_lea.sflag [#allocation5], %s443
        %s445 = sand.u32 %s132, 1
        %s446 = smul.addr %s445, 4
        %s447 = scalar_lea.vmem [#allocation8], %s446
        // Predicated region
        $region49: #{tpu_custom_call.1} parent=31 // pred_check
          %p448 = pneg %p142
        $region50: #{tpu_custom_call.1} parent=31 // pred_check_branch
          %450 = sbr.rel (%p448) target = $region52
        $region51: #{tpu_custom_call.1} parent=31 // pred_region
          %s451 = smul.u32 2, %s27
          %s453 = ssub.s32 64, 64
          %454 = vsyncadd %s444, %s453
          %s455 = smul.addr %s26, 4
          %s456 = sadd.s32 %s451, %s455
          %s457 = smul.addr %s456, 32
          %s458 = scalar_lea.hbm %s3, %s457
          %s460 = sshll.u32 %s447, 4
          %s461 = int_to_ptr.vmem [resolvable:$true] %s460
          %463 = dma.vmem_to_hbm [thread:$0]  %s461, 64, %s458, %s444
        $region52: #{tpu_custom_call.1} parent=31 // pred_fallthru
          _
      $region32: #{tpu_custom_call.1} parent=5 // pred_fallthru
        _
      %p464 = scmp.le.s32.totalorder 2, %s16
      // Predicated region
      $region53: #{tpu_custom_call.1} parent=5 // pred_check
        %p465 = pneg %p464
      $region54: #{tpu_custom_call.1} parent=5 // pred_check_branch
        %467 = sbr.rel (%p465) target = $region56
      $region55: #{tpu_custom_call.1} parent=5 // pred_region
        %s468 = ssub.s32 %s16, 2
        // Predicated region
        $region57: #{tpu_custom_call.1} parent=55 // pred_check
          %p469 = pneg %p148
        $region58: #{tpu_custom_call.1} parent=55 // pred_check_branch
          %471 = sbr.rel (%p469) target = $region60
        $region59: #{tpu_custom_call.1} parent=55 // pred_region
          %s472 = sand.u32 %s133, 1
          %s473 = scalar_lea.sflag [#allocation5], %s472
          %s474 = sand.u32 %s133, 1
          %s475 = smul.addr %s474, 4
          %s476 = scalar_lea.vmem [#allocation8], %s475
          %477 = dma.done %s473, 64
        $region60: #{tpu_custom_call.1} parent=55 // pred_fallthru
          _
      $region56: #{tpu_custom_call.1} parent=5 // pred_fallthru
        _
    $region6: #{tpu_custom_call.1} parent=1 // loop_footer
      %s20 = sadd.s32 1, %s16
    $region7: #{tpu_custom_call.1} parent=1 // loop_footer_branch
      %15 = sbr.rel target = $region3
    $region8: #{tpu_custom_call.1} parent=1 // loop_exit
      _
    %478 = vsyncpa [#allocation4], 1
    %s479 = scalar_lea.sflag [#allocation4], 1
    %480 = vsyncpa %s479, 1
    %481 = vsyncpa [#allocation7], 1
    %s482 = scalar_lea.sflag [#allocation7], 1
    %483 = vsyncpa %s482, 1
    %484 = vsyncpa [#allocation5], 1
    %s485 = scalar_lea.sflag [#allocation5], 1
    %486 = vsyncpa %s485, 1

</llo_original>
